<compile_context>
chip_gen: v5e
topology: v5e:2x2
jax: 0.10.0
libtpu: 0.0.40
codegen_flags: <defaults>
</compile_context>

<pallas_src>
import functools

import jax
import jax.numpy as jnp
from jax import lax
from jax.experimental import pallas as pl
from jax.experimental.pallas import tpu as pltpu


def _round_up(x: int, m: int) -> int:
    return ((x + m - 1) // m) * m


def _lm_head_kernel_noacc(x_ref, w_ref, o_ref):
    """Whole hidden dim in one block: no accumulator, write the tile directly.

    x_ref: (tm, H) activations; w_ref: (tn, H) weight in PyTorch (V, H) layout.
    Contract on the hidden dim of both -> (tm, tn); no HBM-side transpose.
    """
    o_ref[...] = lax.dot_general(
        x_ref[...],
        w_ref[...],
        dimension_numbers=(((1,), (1,)), ((), ())),
        preferred_element_type=jnp.float32,
    ).astype(o_ref.dtype)


def _lm_head_kernel_acc(x_ref, w_ref, o_ref, acc_ref):
    """K-tiled path (tk < H): f32 accumulator across the last grid axis."""
    @pl.when(pl.program_id(2) == 0)
    def _():
        acc_ref[...] = jnp.zeros_like(acc_ref)

    acc_ref[...] += lax.dot_general(
        x_ref[...],
        w_ref[...],
        dimension_numbers=(((1,), (1,)), ((), ())),
        preferred_element_type=jnp.float32,
    )

    @pl.when(pl.program_id(2) == pl.num_programs(2) - 1)
    def _():
        o_ref[...] = acc_ref[...].astype(o_ref.dtype)


@functools.partial(jax.jit, static_argnames=("tm", "tn", "tk", "out_dtype"))
def jadio_lm_head(hidden_states, weight, *, tm=None, tn=512, tk=None,
                  out_dtype=jnp.float32):
    """hidden_states: (B, S, H); weight: (V, H) (PyTorch nn.Linear layout)."""
    B, S, H = hidden_states.shape
    V, Hw = weight.shape
    assert H == Hw, "hidden_size mismatch"

    M = B * S
    x2d = hidden_states.reshape(M, H)

    # Tile defaults: activations fully VMEM-resident (tm = M), full hidden dim
    # per block (tk = H).  Only the vocab axis is tiled, with a wide lane-dense
    # tile, so the weight streams through HBM exactly once per call.
    tm = M if tm is None else tm
    tk = H if tk is None else tk
    tn = min(tn, _round_up(V, 128))

    # Pad ragged edges once in the wrapper (real vocab sizes are not multiples
    # of 128/256); extra rows/cols are zero and sliced off at the end.
    M_pad = _round_up(M, tm)
    V_pad = _round_up(V, tn)
    if M_pad != M:
        x2d = jnp.pad(x2d, ((0, M_pad - M), (0, 0)))
    w = weight
    if V_pad != V:
        w = jnp.pad(w, ((0, V_pad - V), (0, 0)))

    nm, nv = M_pad // tm, V_pad // tn

    if tk == H:
        nk = 1
    else:
        assert H % tk == 0 and tk % 128 == 0, (
            "tk must be a 128-aligned divisor of H when tiling the hidden dim")
        nk = H // tk

    # Explicit VMEM budget: double-buffered x / w / out tiles (+ acc if used),
    # with headroom; capped at 64 MiB so the same tiling compiles on v7x.
    x_tile_b = tm * tk * x2d.dtype.itemsize
    w_tile_b = tn * tk * w.dtype.itemsize
    o_tile_b = tm * tn * jnp.dtype(out_dtype).itemsize
    acc_b = tm * tn * 4 if nk > 1 else 0
    vmem_bytes = 2 * (x_tile_b + w_tile_b + o_tile_b) + acc_b + (4 << 20)
    vmem_bytes = int(min(max(vmem_bytes, 16 << 20), 64 << 20))

    if nk == 1:
        kernel = _lm_head_kernel_noacc
        grid = (nm, nv)
        in_specs = [
            pl.BlockSpec((tm, H), lambda i, j: (i, 0)),   # x: resident across j
            pl.BlockSpec((tn, H), lambda i, j: (j, 0)),   # w: streamed once
        ]
        out_specs = pl.BlockSpec((tm, tn), lambda i, j: (i, j))
        scratch_shapes = []
        dim_sem = ("parallel", "parallel")
    else:
        kernel = _lm_head_kernel_acc
        grid = (nm, nv, nk)
        in_specs = [
            pl.BlockSpec((tm, tk), lambda i, j, k: (i, k)),
            pl.BlockSpec((tn, tk), lambda i, j, k: (j, k)),
        ]
        out_specs = pl.BlockSpec((tm, tn), lambda i, j, k: (i, j))
        scratch_shapes = [pltpu.VMEM((tm, tn), jnp.float32)]
        dim_sem = ("parallel", "parallel", "arbitrary")

    out2d = pl.pallas_call(
        kernel,
        out_shape=jax.ShapeDtypeStruct((M_pad, V_pad), out_dtype),
        grid_spec=pltpu.PrefetchScalarGridSpec(
            num_scalar_prefetch=0,
            grid=grid,
            in_specs=in_specs,
            out_specs=out_specs,
            scratch_shapes=scratch_shapes,
        ),
        compiler_params=pltpu.CompilerParams(
            dimension_semantics=dim_sem,
            vmem_limit_bytes=vmem_bytes,
        ),
    )(x2d, w)

    return out2d[:M, :V].reshape(B, S, V)


if __name__ == "__main__":
    # Small shapes consistent with the module's forward signature.
    batch, seq, hidden, vocab = 2, 8, 32, 256

    key = jax.random.PRNGKey(0)
    k_x, k_w = jax.random.split(key)

    hidden_states = jax.random.normal(k_x, (batch, seq, hidden), dtype=jnp.float32)
    # Deterministic init mirroring nn.init.normal_(std=0.02) on a (V, H) weight.
    weight = 0.02 * jax.random.normal(k_w, (vocab, hidden), dtype=jnp.float32)

    logits = jadio_lm_head(hidden_states, weight)
    logits = jax.block_until_ready(logits)

    # Cross-check against plain JAX reference.
    ref = hidden_states @ weight.T
    assert logits.shape == (batch, seq, vocab)
    assert jnp.allclose(logits, ref, atol=1e-5, rtol=1e-5)

    print("KERNEL_OK")
</pallas_src>

<mosaic_0001>
module attributes {stable_mosaic.version = 11 : i64} {
  func.func @_lm_head_kernel_noacc(%arg0: i32, %arg1: i32, %arg2: memref<16x32xf32, #tpu.memory_space<vmem>>, %arg3: memref<256x32xf32, #tpu.memory_space<vmem>>, %arg4: memref<16x256xf32, #tpu.memory_space<vmem>>) attributes {dimension_semantics = [#tpu.dimension_semantics<parallel>, #tpu.dimension_semantics<parallel>], iteration_bounds = array<i64: 1, 1>, scalar_prefetch = 0 : i64, scratch_operands = 0 : i64, tpu.core_type = #tpu.core_type<tc>, window_params = [{transform_indices = @transform_0, window_bounds = array<i64: 16, 32>}, {transform_indices = @transform_1, window_bounds = array<i64: 256, 32>}, {transform_indices = @transform_2, window_bounds = array<i64: 16, 256>}]} {
    %c0 = arith.constant 0 : index
    %c0_0 = arith.constant 0 : index
    %0 = vector.load %arg2[%c0, %c0_0] : memref<16x32xf32, #tpu.memory_space<vmem>>, vector<16x32xf32>
    %c0_1 = arith.constant 0 : index
    %c0_2 = arith.constant 0 : index
    %1 = vector.load %arg3[%c0_1, %c0_2] : memref<256x32xf32, #tpu.memory_space<vmem>>, vector<256x32xf32>
    %cst = arith.constant dense<0.000000e+00> : vector<16x256xf32>
    %2 = tpu.matmul %0, %1, %cst {dimension_numbers = #tpu.dot_dimension_numbers<[1], [1], [0], [0], [0, 0, 1, 0], [], []>} : vector<16x32xf32>, vector<256x32xf32>, vector<16x256xf32> -> vector<16x256xf32>
    %c0_3 = arith.constant 0 : index
    %c0_4 = arith.constant 0 : index
    %3 = vector.load %arg4[%c0_3, %c0_4] : memref<16x256xf32, #tpu.memory_space<vmem>>, vector<16x256xf32>
    tpu.vector_store %arg4[%c0_3, %c0_4], %2 {strides = array<i32>} : memref<16x256xf32, #tpu.memory_space<vmem>>, vector<16x256xf32>,
    return
  }
  func.func @transform_0(%arg0: i32, %arg1: i32) -> (i32, i32) {
    %c0_i32 = arith.constant 0 : i32
    %c0_i32_0 = arith.constant 0 : i32
    return %arg0, %c0_i32 : i32, i32
  }
  func.func @transform_1(%arg0: i32, %arg1: i32) -> (i32, i32) {
    %c0_i32 = arith.constant 0 : i32
    %c0_i32_0 = arith.constant 0 : i32
    return %arg1, %c0_i32 : i32, i32
  }
  func.func @transform_2(%arg0: i32, %arg1: i32) -> (i32, i32) {
    %c0_i32 = arith.constant 0 : i32
    return %arg0, %arg1 : i32, i32
  }
}

</mosaic_0001>

<llo_original>
// kernel: jadio_lm_head.1
$region0: #{jadio_lm_head.1}
  #allocation0 [shape = 'u32[]', space=smem, size = 0x4, offset = 0x4, fixed_abs, tag = 'smem constant byte address 0x4 - core index']
  #allocation1 [shape = 'u32[72,128]{1,0:T(1,128)}', space=vmem, size = 0x9000, scoped, tag = 'internal scratch']
  %s0 = inlined_call_operand.vmem [shape: f32[16,32], index: 0, kind: input, shape index: {}]
  %s1 = inlined_call_operand.vmem [shape: f32[256,32], index: 1, kind: input, shape index: {}]
  %s2 = inlined_call_operand.hbm [shape: f32[16,256], index: 2, kind: output, shape index: {}]
  %s3 = sld [smem:[#allocation0]]
  $region18: #{jadio_lm_head.1} parent=0
    _
  %s5 = ssub.s32 1, %s3
  %s6 = scalar_select 0, %s5, %s3
  $region1: #{jadio_lm_head.1} parent=0
    #allocation2 [shape = 'u8[16384]{0}', space=vmem, size = 0x4000, scoped, tag = 'output window, operand 0, single buffered']
    #allocation3 [shape = 's32[1]{0}', space=sflag, size = 0x4, scoped, tag = 'scoped memory for jadio_lm_head.1']
    %7 = vsyncpa [#allocation3], 0
    // Predicated region
    $region2: #{jadio_lm_head.1} parent=1 // pred_check
      _
    $region3: #{jadio_lm_head.1} parent=1 // pred_check_branch
      %9 = sbr.rel (0) target = $region5
    $region4: #{jadio_lm_head.1} parent=1 // pred_region
      _
    $region5: #{jadio_lm_head.1} parent=1 // pred_fallthru
      _
    // Predicated region
    $region6: #{jadio_lm_head.1} parent=1 // pred_check
      _
    $region7: #{jadio_lm_head.1} parent=1 // pred_check_branch
      %11 = sbr.rel (0) target = $region9
    $region8: #{jadio_lm_head.1} parent=1 // pred_region
      _
    $region9: #{jadio_lm_head.1} parent=1 // pred_fallthru
      _
    %v12 = vld [vmem:[%s0] sm:$0xff]
    %v13 = vld [vmem:[%s0 + $0x8] sm:$0xff]
    %v14 = vld [vmem:[%s1] sm:$0xff]
    %v15 = vld [vmem:[%s1 + $0x8] sm:$0xff]
    %v16 = vld [vmem:[%s1 + $0x10] sm:$0xff]
    %v17 = vld [vmem:[%s1 + $0x18] sm:$0xff]
    %v18 = vld [vmem:[%s1 + $0x20] sm:$0xff]
    %v19 = vld [vmem:[%s1 + $0x28] sm:$0xff]
    %v20 = vld [vmem:[%s1 + $0x30] sm:$0xff]
    %v21 = vld [vmem:[%s1 + $0x38] sm:$0xff]
    %v22 = vld [vmem:[%s1 + $0x40] sm:$0xff]
    %v23 = vld [vmem:[%s1 + $0x48] sm:$0xff]
    %v24 = vld [vmem:[%s1 + $0x50] sm:$0xff]
    %v25 = vld [vmem:[%s1 + $0x58] sm:$0xff]
    %v26 = vld [vmem:[%s1 + $0x60] sm:$0xff]
    %v27 = vld [vmem:[%s1 + $0x68] sm:$0xff]
    %v28 = vld [vmem:[%s1 + $0x70] sm:$0xff]
    %v29 = vld [vmem:[%s1 + $0x78] sm:$0xff]
    %v30 = vld [vmem:[%s1 + $0x80] sm:$0xff]
    %v31 = vld [vmem:[%s1 + $0x88] sm:$0xff]
    %v32 = vld [vmem:[%s1 + $0x90] sm:$0xff]
    %v33 = vld [vmem:[%s1 + $0x98] sm:$0xff]
    %v34 = vld [vmem:[%s1 + $0xa0] sm:$0xff]
    %v35 = vld [vmem:[%s1 + $0xa8] sm:$0xff]
    %v36 = vld [vmem:[%s1 + $0xb0] sm:$0xff]
    %v37 = vld [vmem:[%s1 + $0xb8] sm:$0xff]
    %v38 = vld [vmem:[%s1 + $0xc0] sm:$0xff]
    %v39 = vld [vmem:[%s1 + $0xc8] sm:$0xff]
    %v40 = vld [vmem:[%s1 + $0xd0] sm:$0xff]
    %v41 = vld [vmem:[%s1 + $0xd8] sm:$0xff]
    %v42 = vld [vmem:[%s1 + $0xe0] sm:$0xff]
    %v43 = vld [vmem:[%s1 + $0xe8] sm:$0xff]
    %v44 = vld [vmem:[%s1 + $0xf0] sm:$0xff]
    %v45 = vld [vmem:[%s1 + $0xf8] sm:$0xff]
    %vm46 = vcmask 261120
    %v48 = vsel %vm46, %v12, 0
    %v51 = vsel %vm46, %v13, 0
    %v54 = vsel %vm46, %v14, 0
    %v57 = vsel %vm46, %v15, 0
    %v60 = vsel %vm46, %v16, 0
    %v63 = vsel %vm46, %v17, 0
    %v66 = vsel %vm46, %v18, 0
    %v69 = vsel %vm46, %v19, 0
    %v72 = vsel %vm46, %v20, 0
    %v75 = vsel %vm46, %v21, 0
    %v78 = vsel %vm46, %v22, 0
    %v81 = vsel %vm46, %v23, 0
    %v84 = vsel %vm46, %v24, 0
    %v87 = vsel %vm46, %v25, 0
    %v90 = vsel %vm46, %v26, 0
    %v93 = vsel %vm46, %v27, 0
    %v96 = vsel %vm46, %v28, 0
    %v99 = vsel %vm46, %v29, 0
    %v102 = vsel %vm46, %v30, 0
    %v105 = vsel %vm46, %v31, 0
    %v108 = vsel %vm46, %v32, 0
    %v111 = vsel %vm46, %v33, 0
    %v114 = vsel %vm46, %v34, 0
    %v117 = vsel %vm46, %v35, 0
    %v120 = vsel %vm46, %v36, 0
    %v123 = vsel %vm46, %v37, 0
    %v126 = vsel %vm46, %v38, 0
    %v129 = vsel %vm46, %v39, 0
    %v132 = vsel %vm46, %v40, 0
    %v135 = vsel %vm46, %v41, 0
    %v138 = vsel %vm46, %v42, 0
    %v141 = vsel %vm46, %v43, 0
    %v144 = vsel %vm46, %v44, 0
    %v147 = vsel %vm46, %v45, 0
    %149 = vmatpush.xpose.msra.mxu0 %v99
    %150 = vmatpush.xpose.msra.mxu0 %v96
    %151 = vmatpush.xpose.msra.mxu0 %v93
    %152 = vmatpush.xpose.msra.mxu0 %v90
    %153 = vmatpush.xpose.msra.mxu0 %v87
    %154 = vmatpush.xpose.msra.mxu0 %v84
    %155 = vmatpush.xpose.msra.mxu0 %v81
    %156 = vmatpush.xpose.msra.mxu0 %v78
    %157 = vmatpush.xpose.msra.mxu0 %v75
    %158 = vmatpush.xpose.msra.mxu0 %v72
    %159 = vmatpush.xpose.msra.mxu0 %v69
    %160 = vmatpush.xpose.msra.mxu0 %v66
    %161 = vmatpush.xpose.msra.mxu0 %v63
    %162 = vmatpush.xpose.msra.mxu0 %v60
    %163 = vmatpush.xpose.msra.mxu0 %v57
    %164 = vmatpush.xpose.msra.mxu0 %v54
    %165 = vmatmul.f32.gmra.mxu0 %v48
    %v166 = vpop.f32.mrf.mxu0
    %v167 = vadd.f32 0.0, %v166
    %168 = vmatmul.f32.gmra.mxu0 %v51
    %v169 = vpop.f32.mrf.mxu0
    %v170 = vadd.f32 0.0, %v169
    %171 = vdwg.mxu0
    %172 = vmatpush.xpose.msra.mxu0 %v147
    %173 = vmatpush.xpose.msra.mxu0 %v144
    %174 = vmatpush.xpose.msra.mxu0 %v141
    %175 = vmatpush.xpose.msra.mxu0 %v138
    %176 = vmatpush.xpose.msra.mxu0 %v135
    %177 = vmatpush.xpose.msra.mxu0 %v132
    %178 = vmatpush.xpose.msra.mxu0 %v129
    %179 = vmatpush.xpose.msra.mxu0 %v126
    %180 = vmatpush.xpose.msra.mxu0 %v123
    %181 = vmatpush.xpose.msra.mxu0 %v120
    %182 = vmatpush.xpose.msra.mxu0 %v117
    %183 = vmatpush.xpose.msra.mxu0 %v114
    %184 = vmatpush.xpose.msra.mxu0 %v111
    %185 = vmatpush.xpose.msra.mxu0 %v108
    %186 = vmatpush.xpose.msra.mxu0 %v105
    %187 = vmatpush.xpose.msra.mxu0 %v102
    %188 = vmatmul.f32.gmra.mxu0 %v48
    %v189 = vpop.f32.mrf.mxu0
    %v190 = vadd.f32 0.0, %v189
    %191 = vmatmul.f32.gmra.mxu0 %v51
    %v192 = vpop.f32.mrf.mxu0
    %v193 = vadd.f32 0.0, %v192
    %194 = vdwg.mxu0
    %195 = vst [vmem:[#allocation2] sm:$0xff] %v167
    %196 = vst [vmem:[#allocation2 + $0x8] sm:$0xff] %v190
    %197 = vst [vmem:[#allocation2 + $0x10] sm:$0xff] %v170
    %198 = vst [vmem:[#allocation2 + $0x18] sm:$0xff] %v193
    // Predicated region
    $region10: #{jadio_lm_head.1} parent=1 // pred_check
      _
    $region11: #{jadio_lm_head.1} parent=1 // pred_check_branch
      %200 = sbr.rel (0) target = $region13
    $region12: #{jadio_lm_head.1} parent=1 // pred_region
      %202 = vsyncadd [#allocation3], 0
      %s203 = sshll.u32 [#allocation2], 4
      %s204 = int_to_ptr.vmem [resolvable:$true] %s203
      %s205 = sshll.u32 %s2, 4
      %s206 = int_to_ptr.hbm [resolvable:$true] %s205
      %211 = dma.vmem_to_hbm [thread:$0]  %s204, 512, %s206, [#allocation3], 256, 256, 16
    $region13: #{jadio_lm_head.1} parent=1 // pred_fallthru
      _
    // Predicated region
    $region14: #{jadio_lm_head.1} parent=1 // pred_check
      _
    $region15: #{jadio_lm_head.1} parent=1 // pred_check_branch
      %213 = sbr.rel (0) target = $region17
    $region16: #{jadio_lm_head.1} parent=1 // pred_region
      %215 = dma.done [#allocation3], 512
    $region17: #{jadio_lm_head.1} parent=1 // pred_fallthru
      _
    %216 = vsyncpa [#allocation3], 1

</llo_original>
